<compile_context>
chip_gen: v7x
topology: tpu7x:2x2x1
jax: 0.10.0
libtpu: 0.0.40
codegen_flags: <defaults>
</compile_context>

<pallas_src>
import math

import jax
import jax.numpy as jnp
import numpy as np
from jax.experimental import pallas as pl
from jax.experimental.pallas import tpu as pltpu


# ----------------------------------------------------------------------------
# DCT filter construction (mirrors the module's __init__ buffer; host-side).
# ----------------------------------------------------------------------------
def _build_filter(pos, freq, POS):
    result = math.cos(math.pi * freq * (pos + 0.5) / POS) / math.sqrt(POS)
    if freq == 0:
        return result
    return result * math.sqrt(2)


def get_dct_filter(tile_size_x, tile_size_y, mapper_x, mapper_y, channel):
    dct_filter = np.zeros((channel, tile_size_x, tile_size_y), dtype=np.float32)
    c_part = channel // len(mapper_x)
    for i, (u_x, v_y) in enumerate(zip(mapper_x, mapper_y)):
        for t_x in range(tile_size_x):
            for t_y in range(tile_size_y):
                dct_filter[i * c_part:(i + 1) * c_part, t_x, t_y] = (
                    _build_filter(t_x, u_x, tile_size_x)
                    * _build_filter(t_y, v_y, tile_size_y))
    return jnp.asarray(dct_filter)


# ----------------------------------------------------------------------------
# Pallas kernel: out[b, c] = sum_hw x[b, c, hw] * w[c, hw]
# ----------------------------------------------------------------------------
def _dct_kernel(x_ref, w_ref, o_ref):
    # x_ref: (TB, TC, HW) VMEM, w_ref: (TC, HW) VMEM, o_ref: (TB, 1, TC) VMEM.
    x = x_ref[...].astype(jnp.float32)
    w = w_ref[...].astype(jnp.float32)
    prod = x * w[None, :, :]                       # (TB, TC, HW)  VALU

    hw = prod.shape[-1]
    if hw % 128 == 0 and hw > 128:
        # Fold the 128-lane groups with VALU adds (lane-aligned slices are
        # cheap vreg selects), then do a single 128->1 cross-lane XLU reduce.
        acc = prod[..., 0:128]
        for g in range(1, hw // 128):
            acc = acc + prod[..., g * 128:(g + 1) * 128]
        s = jnp.sum(acc, axis=-1)                  # (TB, TC)
    else:
        s = jnp.sum(prod, axis=-1)                 # (TB, TC)

    o_ref[...] = s[:, None, :].astype(o_ref.dtype)


# ----------------------------------------------------------------------------
# Tile / VMEM-budget selection
# ----------------------------------------------------------------------------
def _vmem_budget_bytes():
    """Per-kernel working-set budget, derived from the chip's VMEM capacity."""
    phys = 64 * 1024 * 1024  # conservative default: v7x per-TensorCore VMEM
    try:
        info = pltpu.get_tpu_info()
        phys = int(getattr(info, "vmem_capacity_bytes", phys))
    except Exception:
        pass
    # Cap at 24 MiB (safe on every generation) and leave >= 8 MiB headroom for
    # output buffers + Mosaic internal scratch below half the physical VMEM.
    return max(4 * 1024 * 1024, min(24 * 1024 * 1024, phys // 2 - 8 * 1024 * 1024))


def _select_tiles(B, C, HW, x_itemsize, w_itemsize, budget_bytes):
    """Pick (tb, tc): full-C channel tiles preferred, batch tiled to fill VMEM."""
    out_itemsize = 4

    def working_set(tb, tc):
        x_bytes = 2 * tb * tc * HW * x_itemsize      # double-buffered x tile
        w_bytes = 2 * tc * HW * w_itemsize           # double-buffered weight tile
        o_bytes = 2 * tb * 1 * tc * out_itemsize     # double-buffered output tile
        return x_bytes + w_bytes + o_bytes

    # Prefer keeping all channels resident and tiling only the batch.
    tc = C
    if working_set(1, C) > budget_bytes:
        # Split channels: only divisors of C that are multiples of 128, which
        # keeps the x/weight sublane dim (f32 & bf16) and the lane-dense output
        # block legal under the (8,128) tiling rule.
        best = 0
        d = 128
        while d < C:
            if C % d == 0 and working_set(1, d) <= budget_bytes:
                best = d
            d += 128
        tc = best if best else C   # pathological fallback: keep full C, raise limit

    # Grow the batch tile (divisor of B) as long as the working set fits.
    tb = 1
    for cand in range(1, B + 1):
        if B % cand == 0 and working_set(cand, tc) <= budget_bytes:
            tb = cand

    return tb, tc, working_set(tb, tc)


# ----------------------------------------------------------------------------
# Wrapper
# ----------------------------------------------------------------------------
def multispectral_dct(x, dct_weight):
    """x: (B, C, H, W); dct_weight: (C, H, W)  ->  (B, C) float32."""
    B, C, H, W = x.shape
    assert dct_weight.shape == (C, H, W)
    HW = H * W

    # Lane-dense presentation: last dim = H*W (contiguous, free reshape).
    # Native dtypes are kept through the DMA; the kernel accumulates in f32.
    x2 = x.reshape(B, C, HW)
    w2 = dct_weight.reshape(C, HW)

    budget = _vmem_budget_bytes()
    tb, tc, ws = _select_tiles(B, C, HW, x2.dtype.itemsize, w2.dtype.itemsize, budget)
    n_ct = C // tc
    n_bt = B // tb

    # Raise the scoped-VMEM limit explicitly (v5e default is only 16 MiB) but
    # keep it modest so v7x's 64 MiB/core VMEM is never over-committed.
    vmem_limit = max(32 * 1024 * 1024, ws + 8 * 1024 * 1024)

    out3 = pl.pallas_call(
        _dct_kernel,
        out_shape=jax.ShapeDtypeStruct((B, 1, C), jnp.float32),
        grid_spec=pltpu.PrefetchScalarGridSpec(
            num_scalar_prefetch=0,
            # Channel tiles OUTER, batch tiles INNER: the weight block index is
            # constant across the inner batch sweep, so it is not re-DMA'd.
            grid=(n_ct, n_bt),
            in_specs=[
                pl.BlockSpec((tb, tc, HW), lambda c, b: (b, c, 0)),
                pl.BlockSpec((tc, HW), lambda c, b: (c, 0)),
            ],
            out_specs=pl.BlockSpec((tb, 1, tc), lambda c, b: (b, 0, c)),
        ),
        compiler_params=pltpu.CompilerParams(
            # Independent axes -> v7x shards the grid across its 2 TensorCores.
            dimension_semantics=("parallel", "parallel"),
            vmem_limit_bytes=int(vmem_limit),
        ),
    )(x2, w2)

    return out3.reshape(B, C)


def _reference(x, dct_weight):
    """Pure-JAX reference mirroring the torch forward."""
    return jnp.sum(x.astype(jnp.float32) * dct_weight[None].astype(jnp.float32),
                   axis=(2, 3))


if __name__ == "__main__":
    B, C, H, W = 2, 4, 16, 16
    mapper_x = [0, 1]
    mapper_y = [0, 1]                 # num_freq = 2, C % num_freq == 0

    dct_weight = get_dct_filter(H, W, mapper_x, mapper_y, C)

    key = jax.random.PRNGKey(0)
    x = jax.random.normal(key, (B, C, H, W), dtype=jnp.float32)

    out = multispectral_dct(x, dct_weight)
    out = jax.block_until_ready(out)

    ref = _reference(x, dct_weight)
    assert out.shape == (B, C)
    assert jnp.allclose(out, ref, atol=1e-5, rtol=1e-5), "mismatch vs reference"

    print("KERNEL_OK")
</pallas_src>

<mosaic_0001>
module attributes {stable_mosaic.version = 11 : i64} {
  func.func @_dct_kernel(%arg0: i32, %arg1: i32, %arg2: memref<2x4x256xf32, #tpu.memory_space<vmem>>, %arg3: memref<4x256xf32, #tpu.memory_space<vmem>>, %arg4: memref<2x1x4xf32, #tpu.memory_space<vmem>>) attributes {dimension_semantics = [#tpu.dimension_semantics<parallel>, #tpu.dimension_semantics<parallel>], iteration_bounds = array<i64: 1, 1>, scalar_prefetch = 0 : i64, scratch_operands = 0 : i64, tpu.core_type = #tpu.core_type<tc>, window_params = [{transform_indices = @transform_0, window_bounds = array<i64: 2, 4, 256>}, {transform_indices = @transform_1, window_bounds = array<i64: 4, 256>}, {transform_indices = @transform_2, window_bounds = array<i64: 2, 1, 4>}]} {
    %c0 = arith.constant 0 : index
    %c0_0 = arith.constant 0 : index
    %c0_1 = arith.constant 0 : index
    %0 = vector.load %arg2[%c0, %c0_0, %c0_1] : memref<2x4x256xf32, #tpu.memory_space<vmem>>, vector<2x4x256xf32>
    %c0_2 = arith.constant 0 : index
    %c0_3 = arith.constant 0 : index
    %1 = vector.load %arg3[%c0_2, %c0_3] : memref<4x256xf32, #tpu.memory_space<vmem>>, vector<4x256xf32>
    %2 = vector.shape_cast %1 : vector<4x256xf32> to vector<1x4x256xf32>
    %3 = vector.broadcast %2 : vector<1x4x256xf32> to vector<2x4x256xf32>
    %4 = arith.mulf %0, %3 : vector<2x4x256xf32>
    %5 = vector.extract_strided_slice %4 {offsets = [0, 0, 0], sizes = [2, 4, 128], strides = [1, 1, 1]} : vector<2x4x256xf32> to vector<2x4x128xf32>
    %6 = vector.extract_strided_slice %4 {offsets = [0, 0, 128], sizes = [2, 4, 128], strides = [1, 1, 1]} : vector<2x4x256xf32> to vector<2x4x128xf32>
    %7 = arith.addf %5, %6 : vector<2x4x128xf32>
    %cst = arith.constant dense<0.000000e+00> : vector<2x4xf32>
    %8 = vector.multi_reduction <add>, %7, %cst [2] : vector<2x4x128xf32> to vector<2x4xf32>
    %9 = vector.shape_cast %8 : vector<2x4xf32> to vector<2x1x4xf32>
    %c0_4 = arith.constant 0 : index
    %c0_5 = arith.constant 0 : index
    %c0_6 = arith.constant 0 : index
    %10 = vector.load %arg4[%c0_4, %c0_5, %c0_6] : memref<2x1x4xf32, #tpu.memory_space<vmem>>, vector<2x1x4xf32>
    tpu.vector_store %arg4[%c0_4, %c0_5, %c0_6], %9 {strides = array<i32>} : memref<2x1x4xf32, #tpu.memory_space<vmem>>, vector<2x1x4xf32>,
    return
  }
  func.func @transform_0(%arg0: i32, %arg1: i32) -> (i32, i32, i32) {
    %c0_i32 = arith.constant 0 : i32
    %c0_i32_0 = arith.constant 0 : i32
    return %arg1, %arg0, %c0_i32 : i32, i32, i32
  }
  func.func @transform_1(%arg0: i32, %arg1: i32) -> (i32, i32) {
    %c0_i32 = arith.constant 0 : i32
    %c0_i32_0 = arith.constant 0 : i32
    return %arg0, %c0_i32 : i32, i32
  }
  func.func @transform_2(%arg0: i32, %arg1: i32) -> (i32, i32, i32) {
    %c0_i32 = arith.constant 0 : i32
    %c0_i32_0 = arith.constant 0 : i32
    return %arg1, %c0_i32, %arg0 : i32, i32, i32
  }
}

</mosaic_0001>

<llo_original>
// kernel: tpu_custom_call.1
$region0: #{tpu_custom_call.1}
  #allocation0 [shape = 'u32[]', space=smem, size = 0x4, offset = 0x4, fixed_abs, tag = 'smem constant byte address 0x4 - core index']
  #allocation1 [shape = 'u32[144,128]{1,0:T(1,128)}', space=vmem, size = 0x12000, scoped, tag = 'internal scratch']
  %s0 = inlined_call_operand.hbm [shape: f32[2,4,256], index: 0, kind: input, shape index: {}]
  %s1 = inlined_call_operand.hbm [shape: f32[4,256], index: 1, kind: input, shape index: {}]
  %s2 = inlined_call_operand.hbm [shape: f32[2,1,4], index: 2, kind: output, shape index: {}]
  %s3 = sld [smem:[#allocation0]]
  $region26: #{tpu_custom_call.1} parent=0
    _
  %s5 = ssub.s32 1, %s3
  %s6 = scalar_select 0, %s5, %s3
  $region1: #{tpu_custom_call.1} parent=0
    #allocation2 [shape = 'u8[8192]{0}', space=vmem, size = 0x2000, scoped, tag = 'input window, operand 0, single buffered']
    #allocation3 [shape = 's32[1]{0}', space=sflag, size = 0x4, scoped, tag = 'scoped memory for tpu_custom_call.1']
    #allocation4 [shape = 's32[1]{0}', space=sflag, size = 0x4, scoped, tag = 'scoped memory for tpu_custom_call.1']
    #allocation5 [shape = 'u8[4096]{0}', space=vmem, size = 0x1000, scoped, tag = 'input window, operand 1, single buffered']
    #allocation6 [shape = 's32[1]{0}', space=sflag, size = 0x4, scoped, tag = 'scoped memory for tpu_custom_call.1']
    #allocation7 [shape = 'u8[1024]{0}', space=vmem, size = 0x400, scoped, tag = 'output window, operand 0, single buffered']
    %7 = vsyncpa [#allocation3], 0
    %8 = vsyncpa [#allocation6], 0
    %9 = vsyncpa [#allocation4], 0
    // Predicated region
    $region2: #{tpu_custom_call.1} parent=1 // pred_check
      _
    $region3: #{tpu_custom_call.1} parent=1 // pred_check_branch
      %11 = sbr.rel (0) target = $region5
    $region4: #{tpu_custom_call.1} parent=1 // pred_region
      %s13 = ssub.s32 256, 256
      %14 = vsyncadd [#allocation3], %s13
      %s15 = sshll.u32 [#allocation2], 4
      %s16 = int_to_ptr.vmem [resolvable:$true] %s15
      %21 = dma.hbm_to_vmem [thread:$0]  %s0, 256, %s16, [#allocation3], 128, 128, 8
    $region5: #{tpu_custom_call.1} parent=1 // pred_fallthru
      _
    // Predicated region
    $region6: #{tpu_custom_call.1} parent=1 // pred_check
      _
    $region7: #{tpu_custom_call.1} parent=1 // pred_check_branch
      %23 = sbr.rel (0) target = $region9
    $region8: #{tpu_custom_call.1} parent=1 // pred_region
      %s25 = ssub.s32 128, 128
      %26 = vsyncadd [#allocation6], %s25
      %s28 = sshll.u32 [#allocation5], 4
      %s29 = int_to_ptr.vmem [resolvable:$true] %s28
      %31 = dma.hbm_to_vmem [thread:$0]  %s1, 128, %s29, [#allocation6]
    $region9: #{tpu_custom_call.1} parent=1 // pred_fallthru
      _
    // Predicated region
    $region10: #{tpu_custom_call.1} parent=1 // pred_check
      _
    $region11: #{tpu_custom_call.1} parent=1 // pred_check_branch
      %33 = sbr.rel (0) target = $region13
    $region12: #{tpu_custom_call.1} parent=1 // pred_region
      %34 = dma.done [#allocation3], 256
    $region13: #{tpu_custom_call.1} parent=1 // pred_fallthru
      _
    // Predicated region
    $region14: #{tpu_custom_call.1} parent=1 // pred_check
      _
    $region15: #{tpu_custom_call.1} parent=1 // pred_check_branch
      %36 = sbr.rel (0) target = $region17
    $region16: #{tpu_custom_call.1} parent=1 // pred_region
      %37 = dma.done [#allocation6], 128
    $region17: #{tpu_custom_call.1} parent=1 // pred_fallthru
      _
    %v38 = vld [vmem:[#allocation2] sm:$0xff]
    %v39 = vld [vmem:[#allocation2 + $0x8] sm:$0xff]
    %v40 = vld [vmem:[#allocation5] sm:$0xff]
    %v41 = vmul.f32 %v38, %v40
    %v42 = vmul.f32 %v39, %v40
    %v45 = vrot.slane %v41, 4
    %v46 = vrot.slane %v42, 4
    %v49 = vadd.f32 %v41, %v45
    %v50 = vadd.f32 %v42, %v46
    %vm51 = vcmask 1043456
    %v52 = vsel %vm51, %v49, 0.0
    %53 = vadd.xlane.f32.xlu0 %v52
    %v54 = vpop.xlane.xlu0 %53
    %v55 = vsel %vm51, %v50, 0.0
    %56 = vadd.xlane.f32.xlu0 %v55
    %v57 = vpop.xlane.xlu0 %56
    %v60 = vlaneseq
    %v61 = vand.u32 %v60, 127
    %v62 = vlaneseq
    %v63 = vshrl.u32 %v62, 7
    %v64 = vsub.s32 %v61, %v63
    %v65 = vrot.slane %v54, %v64
    %v66 = vlaneseq
    %v67 = vshrl.u32 %v66, 7
    %v68 = vsub.s32 %v61, %v67
    %v69 = vrot.slane %v57, %v68
    %vm72 = vcmask 24576
    %73 = vst.msk [vmem:[#allocation7] sm:$0x1] %vm72, %v65
    %74 = vst.msk [vmem:[#allocation7 + $0x1] sm:$0x1] %vm72, %v69
    // Predicated region
    $region18: #{tpu_custom_call.1} parent=1 // pred_check
      _
    $region19: #{tpu_custom_call.1} parent=1 // pred_check_branch
      %76 = sbr.rel (0) target = $region21
    $region20: #{tpu_custom_call.1} parent=1 // pred_region
      %s78 = ssub.s32 32, 32
      %79 = vsyncadd [#allocation4], %s78
      %s80 = sshll.u32 [#allocation7], 4
      %s81 = int_to_ptr.vmem [resolvable:$true] %s80
      %86 = dma.vmem_to_hbm [thread:$0]  %s81, 32, %s2, [#allocation4], 16, 16, 1
    $region21: #{tpu_custom_call.1} parent=1 // pred_fallthru
      _
    // Predicated region
    $region22: #{tpu_custom_call.1} parent=1 // pred_check
      _
    $region23: #{tpu_custom_call.1} parent=1 // pred_check_branch
      %88 = sbr.rel (0) target = $region25
    $region24: #{tpu_custom_call.1} parent=1 // pred_region
      %89 = dma.done [#allocation4], 32
    $region25: #{tpu_custom_call.1} parent=1 // pred_fallthru
      _
    %90 = vsyncpa [#allocation3], 1
    %91 = vsyncpa [#allocation6], 1
    %92 = vsyncpa [#allocation4], 1

</llo_original>
